<compile_context>
chip_gen: v6e
topology: v6e:2x2x1
jax: 0.10.0
libtpu: 0.0.40
codegen_flags: <defaults>
</compile_context>

<pallas_src>
import functools

import jax
import jax.numpy as jnp
from jax import lax
from jax.experimental import pallas as pl
from jax.experimental.pallas import tpu as pltpu


_NEG = float(jnp.finfo(jnp.float32).min)  # large finite "-inf" substitute


def _sdpa_kernel(*refs, temperature, mask_mode):
    if mask_mode == "none":
        q_ref, k_ref, v_ref, out_ref, attn_ref = refs
        m_ref = None
    else:
        q_ref, k_ref, v_ref, m_ref, out_ref, attn_ref = refs

    # Blocks: q (G, tq, Dk), k (G, Lk, Dk), v (G, Lk, Dv).
    # Feed the MXU in the native input dtype; accumulate in f32.
    q = q_ref[...]
    k = k_ref[...]
    v = v_ref[...]

    # scores = q @ k^T over the feature dim, batched over the fused-heads dim.
    scores = lax.dot_general(
        q, k, (((2,), (2,)), ((0,), (0,))),
        preferred_element_type=jnp.float32)
    scores = scores * jnp.float32(1.0 / temperature)

    if mask_mode == "shared":
        keep = m_ref[...] != 0                 # (tq, Lk) int8 tile, resident
        scores = jnp.where(keep[None, :, :], scores, _NEG)
    elif mask_mode == "per_head":
        keep = m_ref[...] != 0                 # (G, tq, Lk)
        scores = jnp.where(keep, scores, _NEG)

    # numerically-stable softmax over the key axis (f32)
    row_max = jnp.max(scores, axis=-1, keepdims=True)
    p = jnp.exp(scores - row_max)                          # EUP
    denom = jnp.sum(p, axis=-1, keepdims=True)
    attn = p * pl.reciprocal(denom)                        # EUP recip + VPU mul

    # TODO(synk): training-mode dropout (p=0.1) omitted; eval-mode forward.
    out = lax.dot_general(
        attn.astype(v.dtype), v, (((2,), (1,)), ((0,), (0,))),
        preferred_element_type=jnp.float32)                # MXU

    out_ref[...] = out.astype(out_ref.dtype)
    attn_ref[...] = attn.astype(attn_ref.dtype)


def _largest_divisor_leq(n, cap):
    cap = max(1, min(n, cap))
    for t in range(cap, 0, -1):
        if n % t == 0:
            return t
    return 1


def scaled_dot_product_attention(q, k, v, mask=None, *, temperature,
                                 heads_per_step=None, q_tile=None):
    """Pallas equivalent of ScaledDotProductAttention.forward (eval mode).

    q, k, v: (B, H, L, D) arrays.  mask: broadcastable to (B, H, Lq, Lk),
    0 => masked out.  Returns (output, attn) like the PyTorch module.
    """
    B, H, Lq, Dk = q.shape
    Lk = k.shape[2]
    Dv = v.shape[3]
    BH = B * H

    # ---- tiling choices ----------------------------------------------------
    tq = q_tile if q_tile is not None else _largest_divisor_leq(Lq, 512)

    if heads_per_step is None:
        # Fuse heads per step when the per-head score tile is tiny, but keep
        # at least 2 grid steps so both v7x TensorCores get work.
        target = max(1, 32768 // max(1, tq * Lk))
        if BH >= 2:
            target = min(target, BH // 2)
        G = _largest_divisor_leq(BH, max(1, target))
    else:
        G = heads_per_step
    assert BH % G == 0 and Lq % tq == 0

    qf = q.reshape(BH, Lq, Dk)
    kf = k.reshape(BH, Lk, Dk)
    vf = v.reshape(BH, Lk, Dv)

    grid = (BH // G, Lq // tq)

    in_arrays = [qf, kf, vf]
    in_specs = [
        pl.BlockSpec((G, tq, Dk), lambda g, qi: (g, qi, 0)),
        # k/v index_maps ignore the q-tile axis -> stay resident across q tiles
        pl.BlockSpec((G, Lk, Dk), lambda g, qi: (g, 0, 0)),
        pl.BlockSpec((G, Lk, Dv), lambda g, qi: (g, 0, 0)),
    ]

    # ---- mask plumbing: small, int8, resident where possible ----------------
    if mask is None:
        mask_mode = "none"
        mask_bytes = 0
    else:
        m = jnp.asarray(mask)
        if m.ndim < 2:
            m = jnp.broadcast_to(m, (Lq, Lk))
        varies_over_heads = any(d != 1 for d in m.shape[:-2])
        if not varies_over_heads:
            mask_mode = "shared"
            mf = jnp.broadcast_to(m.reshape(m.shape[-2:]), (Lq, Lk)).astype(jnp.int8)
            in_arrays.append(mf)
            # index_map ignores the head axis -> never re-DMA'd across heads
            in_specs.append(pl.BlockSpec((tq, Lk), lambda g, qi: (qi, 0)))
            mask_bytes = tq * Lk
        else:
            mask_mode = "per_head"
            mf = jnp.broadcast_to(m.astype(jnp.int8),
                                  (B, H, Lq, Lk)).reshape(BH, Lq, Lk)
            in_arrays.append(mf)
            in_specs.append(pl.BlockSpec((G, tq, Lk), lambda g, qi: (g, qi, 0)))
            mask_bytes = G * tq * Lk

    # ---- VMEM budget: raise v5e's 16 MiB default, stay <= v7x's 64 MiB ------
    itemsize = jnp.dtype(q.dtype).itemsize
    per_step = (G * tq * Dk + G * Lk * Dk + G * Lk * Dv
                + G * tq * Dv + G * tq * Lk) * itemsize + mask_bytes
    vmem_limit = int(min(64 * 1024 * 1024,
                         max(32 * 1024 * 1024, 4 * per_step)))

    kernel = functools.partial(_sdpa_kernel,
                               temperature=float(temperature),
                               mask_mode=mask_mode)

    out, attn = pl.pallas_call(
        kernel,
        out_shape=(
            jax.ShapeDtypeStruct((BH, Lq, Dv), q.dtype),
            jax.ShapeDtypeStruct((BH, Lq, Lk), q.dtype),
        ),
        grid=grid,
        in_specs=in_specs,
        out_specs=(
            pl.BlockSpec((G, tq, Dv), lambda g, qi: (g, qi, 0)),
            pl.BlockSpec((G, tq, Lk), lambda g, qi: (g, qi, 0)),
        ),
        compiler_params=pltpu.CompilerParams(
            dimension_semantics=("parallel", "parallel"),
            vmem_limit_bytes=vmem_limit),
    )(*in_arrays)

    return out.reshape(B, H, Lq, Dv), attn.reshape(B, H, Lq, Lk)


def _sdpa_ref(q, k, v, mask, temperature):
    """Pure-JAX reference mirroring the PyTorch forward (eval mode)."""
    attn = jnp.einsum('bhqd,bhkd->bhqk', q / temperature, k)
    if mask is not None:
        attn = jnp.where(mask == 0, -jnp.inf, attn)
    attn = jax.nn.softmax(attn, axis=-1)
    out = jnp.einsum('bhqk,bhkd->bhqd', attn, v)
    return out, attn


if __name__ == "__main__":
    B, H, Lq, Lk, Dk, Dv = 2, 2, 8, 8, 32, 32
    temperature = float(Dk) ** 0.5

    key = jax.random.PRNGKey(0)
    kq, kk, kv = jax.random.split(key, 3)
    q = jax.random.normal(kq, (B, H, Lq, Dk), dtype=jnp.float32)
    k = jax.random.normal(kk, (B, H, Lk, Dk), dtype=jnp.float32)
    v = jax.random.normal(kv, (B, H, Lk, Dv), dtype=jnp.float32)

    # causal mask broadcast over batch & heads (mask == 0 -> masked)
    mask = jnp.tril(jnp.ones((Lq, Lk), dtype=jnp.int32))[None, None]

    # masked path
    out, attn = scaled_dot_product_attention(q, k, v, mask,
                                             temperature=temperature)
    out, attn = jax.block_until_ready((out, attn))
    ref_out, ref_attn = _sdpa_ref(q, k, v, mask, temperature)
    assert out.shape == (B, H, Lq, Dv), out.shape
    assert attn.shape == (B, H, Lq, Lk), attn.shape
    assert jnp.allclose(attn, ref_attn, atol=1e-5, rtol=1e-5), "attn mismatch"
    assert jnp.allclose(out, ref_out, atol=1e-5, rtol=1e-5), "output mismatch"

    # mask=None fast path (no mask input, no where)
    out2, attn2 = scaled_dot_product_attention(q, k, v, None,
                                               temperature=temperature)
    out2, attn2 = jax.block_until_ready((out2, attn2))
    ref_out2, ref_attn2 = _sdpa_ref(q, k, v, None, temperature)
    assert jnp.allclose(attn2, ref_attn2, atol=1e-5, rtol=1e-5), "attn mismatch (no mask)"
    assert jnp.allclose(out2, ref_out2, atol=1e-5, rtol=1e-5), "output mismatch (no mask)"

    print("KERNEL_OK")
</pallas_src>

<mosaic_0001>
module attributes {stable_mosaic.version = 11 : i64} {
  func.func @_sdpa_kernel(%arg0: i32, %arg1: i32, %arg2: memref<2x8x32xf32, #tpu.memory_space<vmem>>, %arg3: memref<2x8x32xf32, #tpu.memory_space<vmem>>, %arg4: memref<2x8x32xf32, #tpu.memory_space<vmem>>, %arg5: memref<8x8xi8, #tpu.memory_space<vmem>>, %arg6: memref<2x8x32xf32, #tpu.memory_space<vmem>>, %arg7: memref<2x8x8xf32, #tpu.memory_space<vmem>>) attributes {dimension_semantics = [#tpu.dimension_semantics<parallel>, #tpu.dimension_semantics<parallel>], iteration_bounds = array<i64: 2, 1>, scalar_prefetch = 0 : i64, scratch_operands = 0 : i64, tpu.core_type = #tpu.core_type<tc>, window_params = [{transform_indices = @transform_0, window_bounds = array<i64: 2, 8, 32>}, {transform_indices = @transform_1, window_bounds = array<i64: 2, 8, 32>}, {transform_indices = @transform_2, window_bounds = array<i64: 2, 8, 32>}, {transform_indices = @transform_3, window_bounds = array<i64: 8, 8>}, {transform_indices = @transform_4, window_bounds = array<i64: 2, 8, 32>}, {transform_indices = @transform_5, window_bounds = array<i64: 2, 8, 8>}]} {
    %c0 = arith.constant 0 : index
    %c0_0 = arith.constant 0 : index
    %c0_1 = arith.constant 0 : index
    %0 = vector.load %arg2[%c0, %c0_0, %c0_1] : memref<2x8x32xf32, #tpu.memory_space<vmem>>, vector<2x8x32xf32>
    %c0_2 = arith.constant 0 : index
    %c0_3 = arith.constant 0 : index
    %c0_4 = arith.constant 0 : index
    %1 = vector.load %arg3[%c0_2, %c0_3, %c0_4] : memref<2x8x32xf32, #tpu.memory_space<vmem>>, vector<2x8x32xf32>
    %c0_5 = arith.constant 0 : index
    %c0_6 = arith.constant 0 : index
    %c0_7 = arith.constant 0 : index
    %2 = vector.load %arg4[%c0_5, %c0_6, %c0_7] : memref<2x8x32xf32, #tpu.memory_space<vmem>>, vector<2x8x32xf32>
    %cst = arith.constant dense<0.000000e+00> : vector<2x8x8xf32>
    %3 = tpu.matmul %0, %1, %cst {dimension_numbers = #tpu.dot_dimension_numbers<[2], [2], [1], [1], [0, 0, 0, 1, 1, 1], [0], [0]>} : vector<2x8x32xf32>, vector<2x8x32xf32>, vector<2x8x8xf32> -> vector<2x8x8xf32>
    %cst_8 = arith.constant 0.176776692 : f32
    %4 = vector.broadcast %cst_8 : f32 to vector<2x8x8xf32>
    %5 = arith.mulf %3, %4 : vector<2x8x8xf32>
    %c0_9 = arith.constant 0 : index
    %c0_10 = arith.constant 0 : index
    %6 = vector.load %arg5[%c0_9, %c0_10] : memref<8x8xi8, #tpu.memory_space<vmem>>, vector<8x8xi8>
    %c0_i8 = arith.constant 0 : i8
    %7 = vector.broadcast %c0_i8 : i8 to vector<8x8xi8>
    %8 = arith.cmpi ne, %6, %7 : vector<8x8xi8>
    %9 = vector.shape_cast %8 : vector<8x8xi1> to vector<1x8x8xi1>
    %cst_11 = arith.constant -3.40282347E+38 : f32
    %10 = vector.shape_cast %9 : vector<1x8x8xi1> to vector<1x8x8xi1>
    %11 = vector.broadcast %10 : vector<1x8x8xi1> to vector<2x8x8xi1>
    %12 = vector.broadcast %cst_11 : f32 to vector<2x8x8xf32>
    %13 = arith.select %11, %5, %12 : vector<2x8x8xi1>, vector<2x8x8xf32>
    %cst_12 = arith.constant dense<0xFF800000> : vector<2x8xf32>
    %14 = vector.multi_reduction <maximumf>, %13, %cst_12 [2] : vector<2x8x8xf32> to vector<2x8xf32>
    %15 = vector.shape_cast %14 : vector<2x8xf32> to vector<2x8x1xf32>
    %16 = vector.broadcast %15 : vector<2x8x1xf32> to vector<2x8x8xf32>
    %17 = arith.subf %13, %16 : vector<2x8x8xf32>
    %18 = math.exp %17 : vector<2x8x8xf32>
    %cst_13 = arith.constant dense<0.000000e+00> : vector<2x8xf32>
    %19 = vector.multi_reduction <add>, %18, %cst_13 [2] : vector<2x8x8xf32> to vector<2x8xf32>
    %20 = vector.shape_cast %19 : vector<2x8xf32> to vector<2x8x1xf32>
    %21 = tpu.reciprocal %20 : vector<2x8x1xf32> -> vector<2x8x1xf32>
    %22 = vector.broadcast %21 : vector<2x8x1xf32> to vector<2x8x8xf32>
    %23 = arith.mulf %18, %22 : vector<2x8x8xf32>
    %cst_14 = arith.constant dense<0.000000e+00> : vector<2x8x32xf32>
    %24 = tpu.matmul %23, %2, %cst_14 {dimension_numbers = #tpu.dot_dimension_numbers<[2], [1], [1], [2], [0, 0, 0, 1, 1, 2], [0], [0]>} : vector<2x8x8xf32>, vector<2x8x32xf32>, vector<2x8x32xf32> -> vector<2x8x32xf32>
    %c0_15 = arith.constant 0 : index
    %c0_16 = arith.constant 0 : index
    %c0_17 = arith.constant 0 : index
    %25 = vector.load %arg6[%c0_15, %c0_16, %c0_17] : memref<2x8x32xf32, #tpu.memory_space<vmem>>, vector<2x8x32xf32>
    tpu.vector_store %arg6[%c0_15, %c0_16, %c0_17], %24 {strides = array<i32>} : memref<2x8x32xf32, #tpu.memory_space<vmem>>, vector<2x8x32xf32>,
    %c0_18 = arith.constant 0 : index
    %c0_19 = arith.constant 0 : index
    %c0_20 = arith.constant 0 : index
    %26 = vector.load %arg7[%c0_18, %c0_19, %c0_20] : memref<2x8x8xf32, #tpu.memory_space<vmem>>, vector<2x8x8xf32>
    tpu.vector_store %arg7[%c0_18, %c0_19, %c0_20], %23 {strides = array<i32>} : memref<2x8x8xf32, #tpu.memory_space<vmem>>, vector<2x8x8xf32>,
    return
  }
  func.func @transform_0(%arg0: i32, %arg1: i32) -> (i32, i32, i32) {
    %c0_i32 = arith.constant 0 : i32
    %c0_i32_0 = arith.constant 0 : i32
    return %arg0, %arg1, %c0_i32 : i32, i32, i32
  }
  func.func @transform_1(%arg0: i32, %arg1: i32) -> (i32, i32, i32) {
    %c0_i32 = arith.constant 0 : i32
    %c0_i32_0 = arith.constant 0 : i32
    %c0_i32_1 = arith.constant 0 : i32
    return %arg0, %c0_i32, %c0_i32_0 : i32, i32, i32
  }
  func.func @transform_2(%arg0: i32, %arg1: i32) -> (i32, i32, i32) {
    %c0_i32 = arith.constant 0 : i32
    %c0_i32_0 = arith.constant 0 : i32
    %c0_i32_1 = arith.constant 0 : i32
    return %arg0, %c0_i32, %c0_i32_0 : i32, i32, i32
  }
  func.func @transform_3(%arg0: i32, %arg1: i32) -> (i32, i32) {
    %c0_i32 = arith.constant 0 : i32
    %c0_i32_0 = arith.constant 0 : i32
    return %arg1, %c0_i32 : i32, i32
  }
  func.func @transform_4(%arg0: i32, %arg1: i32) -> (i32, i32, i32) {
    %c0_i32 = arith.constant 0 : i32
    %c0_i32_0 = arith.constant 0 : i32
    return %arg0, %arg1, %c0_i32 : i32, i32, i32
  }
  func.func @transform_5(%arg0: i32, %arg1: i32) -> (i32, i32, i32) {
    %c0_i32 = arith.constant 0 : i32
    %c0_i32_0 = arith.constant 0 : i32
    return %arg0, %arg1, %c0_i32 : i32, i32, i32
  }
}

</mosaic_0001>

<llo_original>
// kernel: tpu_custom_call.1
$region0: #{tpu_custom_call.1}
  #allocation0 [shape = 'u32[]', space=smem, size = 0x4, offset = 0x4, fixed_abs, tag = 'smem constant byte address 0x4 - core index']
  #allocation1 [shape = 'u32[144,128]{1,0:T(1,128)}', space=vmem, size = 0x12000, scoped, tag = 'internal scratch']
  %s0 = inlined_call_operand.hbm [shape: f32[4,8,32], index: 0, kind: input, shape index: {}]
  %s1 = inlined_call_operand.hbm [shape: f32[4,8,32], index: 1, kind: input, shape index: {}]
  %s2 = inlined_call_operand.hbm [shape: f32[4,8,32], index: 2, kind: input, shape index: {}]
  %s3 = inlined_call_operand.vmem [shape: s8[8,8], index: 3, kind: input, shape index: {}]
  %s4 = inlined_call_operand.hbm [shape: f32[4,8,32], index: 4, kind: output, shape index: {0}]
  %s5 = inlined_call_operand.hbm [shape: f32[4,8,8], index: 5, kind: output, shape index: {1}]
  %6 = xla_tuple %s4, %s5
  %s7 = sld [smem:[#allocation0]]
  $region69: #{tpu_custom_call.1} parent=0
    _
  %s9 = ssub.s32 1, %s7
  %s10 = scalar_select 0, %s9, %s7
  $region1: #{tpu_custom_call.1} parent=0
    #allocation2 [shape = 'u8[16384]{0}', space=vmem, size = 0x4000, scoped, tag = 'input window, operand 0']
    #allocation3 [shape = 's32[2]{0}', space=sflag, size = 0x8, scoped, tag = 'scoped memory for tpu_custom_call.1']
    #allocation4 [shape = 's32[2]{0}', space=sflag, size = 0x8, scoped, tag = 'scoped memory for tpu_custom_call.1']
    #allocation5 [shape = 'u8[16384]{0}', space=vmem, size = 0x4000, scoped, tag = 'input window, operand 1']
    #allocation6 [shape = 's32[2]{0}', space=sflag, size = 0x8, scoped, tag = 'scoped memory for tpu_custom_call.1']
    #allocation7 [shape = 'u8[16384]{0}', space=vmem, size = 0x4000, scoped, tag = 'input window, operand 2']
    #allocation8 [shape = 'u8[16384]{0}', space=vmem, size = 0x4000, scoped, tag = 'output window, operand 0']
    #allocation9 [shape = 'u8[16384]{0}', space=vmem, size = 0x4000, scoped, tag = 'output window, operand 1']
    #allocation10 [shape = 's32[2]{0}', space=sflag, size = 0x8, scoped, tag = 'scoped memory for tpu_custom_call.1']
    %11 = vsyncpa [#allocation3], 0
    %s12 = scalar_lea.sflag [#allocation3], 1
    %13 = vsyncpa %s12, 0
    %14 = vsyncpa [#allocation6], 0
    %s15 = scalar_lea.sflag [#allocation6], 1
    %16 = vsyncpa %s15, 0
    %17 = vsyncpa [#allocation4], 0
    %s18 = scalar_lea.sflag [#allocation4], 1
    %19 = vsyncpa %s18, 0
    %20 = vsyncpa [#allocation10], 0
    %s21 = scalar_lea.sflag [#allocation10], 1
    %22 = vsyncpa %s21, 0
    loop: start=0, step=1, limit=4
    $region2: #{tpu_custom_call.1} parent=1 // loop_pre_header
      _
    $region3: #{tpu_custom_call.1} parent=1 // loop_header
      %s24 = sphi 0, %s28
      %p25 = scmp.ge.s32.totalorder %s24, 4
      %s31 = sphi 0, %s43
      %s32 = sphi 0, %s39
      %s33 = sphi 0, %s31
      %s34 = sphi 0, %s32
      %s35 = sphi 0, %s33
      %s36 = sphi 0, %s34
      %s48 = sphi 0, %s50
      %s51 = sphi 0, %s48
      %s52 = sphi 0, %s51
      %s68 = sphi 0, %s52
      %s74 = sphi 0, %s76
      %s77 = sphi 0, %s74
      %s78 = sphi 0, %s77
      %s94 = sphi 0, %s78
      %s100 = sphi 0, %s102
      %s103 = sphi 0, %s100
      %s104 = sphi 0, %s103
      %s120 = sphi 0, %s104
      %s126 = sphi 0, %s128
      %s129 = sphi 0, %s126
      %s130 = sphi 0, %s129
      %s146 = sphi 0, %s130
      %s154 = sphi 0, %s156
      %s157 = sphi 0, %s154
      %s158 = sphi 0, %s157
      %s174 = sphi 0, %s158
      %s182 = sphi 0, %s184
      %s185 = sphi 0, %s182
      %s186 = sphi 0, %s185
      %s202 = sphi 0, %s186
    $region4: #{tpu_custom_call.1} parent=1 // loop_header_branch
      %27 = sbr.rel (%p25) target = $region8
    $region5: #{tpu_custom_call.1} parent=1 // loop_body
      %s29 = ssub.s32 %s24, 1
      %s30 = ssub.s32 %s24, 2
      %s37 = sadd.s32 1, %s32
      %p38 = scmp.ge.s32.totalorder %s37, 1
      %s39 = scalar_select %p38, 0, %s37
      %s40 = sadd.s32 1, %s31
      %s41 = scalar_select %p38, %s40, %s31
      %p42 = scmp.ge.s32.totalorder %s41, 2
      %s43 = scalar_select %p42, 0, %s41
      %s44 = ssub.s32 %s31, %s43
      %s45 = ssub.s32 %s32, %s39
      %s46 = sor.u32 %s44, %s45
      %p47 = scmp.eq.s32.totalorder %s46, 0
      %s49 = sadd.s32 %s48, 1
      %s50 = scalar_select %p47, %s48, %s49
      %p53 = pneg %p47
      %p54 = scmp.eq.s32.totalorder %s24, 1
      %p55 = por %p53, %p54
      %p56 = scmp.ne.s32.totalorder %s48, %s51
      %p57 = scmp.eq.s32.totalorder %s24, 0
      %p58 = por %p56, %p57
      %p59 = scmp.ne.s32.totalorder %s48, %s51
      %p60 = scmp.eq.s32.totalorder %s29, 1
      %p61 = por %p59, %p60
      %p62 = scmp.ne.s32.totalorder %s51, %s52
      %p63 = scmp.eq.s32.totalorder %s29, 0
      %p64 = por %p62, %p63
      %p65 = scmp.ne.s32.totalorder %s51, %s52
      %p66 = scmp.eq.s32.totalorder %s30, 1
      %p67 = por %p65, %p66
      %p69 = scmp.ne.s32.totalorder %s52, %s68
      %p70 = scmp.eq.s32.totalorder %s30, 0
      %p71 = por %p69, %p70
      %s72 = ssub.s32 %s31, %s43
      %p73 = scmp.eq.s32.totalorder %s72, 0
      %s75 = sadd.s32 %s74, 1
      %s76 = scalar_select %p73, %s74, %s75
      %p79 = pneg %p73
      %p80 = scmp.eq.s32.totalorder %s24, 1
      %p81 = por %p79, %p80
      %p82 = scmp.ne.s32.totalorder %s74, %s77
      %p83 = scmp.eq.s32.totalorder %s24, 0
      %p84 = por %p82, %p83
      %p85 = scmp.ne.s32.totalorder %s74, %s77
      %p86 = scmp.eq.s32.totalorder %s29, 1
      %p87 = por %p85, %p86
      %p88 = scmp.ne.s32.totalorder %s77, %s78
      %p89 = scmp.eq.s32.totalorder %s29, 0
      %p90 = por %p88, %p89
      %p91 = scmp.ne.s32.totalorder %s77, %s78
      %p92 = scmp.eq.s32.totalorder %s30, 1
      %p93 = por %p91, %p92
      %p95 = scmp.ne.s32.totalorder %s78, %s94
      %p96 = scmp.eq.s32.totalorder %s30, 0
      %p97 = por %p95, %p96
      %s98 = ssub.s32 %s31, %s43
      %p99 = scmp.eq.s32.totalorder %s98, 0
      %s101 = sadd.s32 %s100, 1
      %s102 = scalar_select %p99, %s100, %s101
      %p105 = pneg %p99
      %p106 = scmp.eq.s32.totalorder %s24, 1
      %p107 = por %p105, %p106
      %p108 = scmp.ne.s32.totalorder %s100, %s103
      %p109 = scmp.eq.s32.totalorder %s24, 0
      %p110 = por %p108, %p109
      %p111 = scmp.ne.s32.totalorder %s100, %s103
      %p112 = scmp.eq.s32.totalorder %s29, 1
      %p113 = por %p111, %p112
      %p114 = scmp.ne.s32.totalorder %s103, %s104
      %p115 = scmp.eq.s32.totalorder %s29, 0
      %p116 = por %p114, %p115
      %p117 = scmp.ne.s32.totalorder %s103, %s104
      %p118 = scmp.eq.s32.totalorder %s30, 1
      %p119 = por %p117, %p118
      %p121 = scmp.ne.s32.totalorder %s104, %s120
      %p122 = scmp.eq.s32.totalorder %s30, 0
      %p123 = por %p121, %p122
      %s124 = ssub.s32 %s32, %s39
      %p125 = scmp.eq.s32.totalorder %s124, 0
      %s127 = sadd.s32 %s126, 1
      %s128 = scalar_select %p125, %s126, %s127
      %p131 = pneg %p125
      %p132 = scmp.eq.s32.totalorder %s24, 1
      %p133 = por %p131, %p132
      %p134 = scmp.ne.s32.totalorder %s126, %s129
      %p135 = scmp.eq.s32.totalorder %s24, 0
      %p136 = por %p134, %p135
      %p137 = scmp.ne.s32.totalorder %s126, %s129
      %p138 = scmp.eq.s32.totalorder %s29, 1
      %p139 = por %p137, %p138
      %p140 = scmp.ne.s32.totalorder %s129, %s130
      %p141 = scmp.eq.s32.totalorder %s29, 0
      %p142 = por %p140, %p141
      %p143 = scmp.ne.s32.totalorder %s129, %s130
      %p144 = scmp.eq.s32.totalorder %s30, 1
      %p145 = por %p143, %p144
      %p147 = scmp.ne.s32.totalorder %s130, %s146
      %p148 = scmp.eq.s32.totalorder %s30, 0
      %p149 = por %p147, %p148
      %s150 = ssub.s32 %s31, %s43
      %s151 = ssub.s32 %s32, %s39
      %s152 = sor.u32 %s150, %s151
      %p153 = scmp.eq.s32.totalorder %s152, 0
      %s155 = sadd.s32 %s154, 1
      %s156 = scalar_select %p153, %s154, %s155
      %p159 = pneg %p153
      %p160 = scmp.eq.s32.totalorder %s24, 1
      %p161 = por %p159, %p160
      %p162 = scmp.ne.s32.totalorder %s154, %s157
      %p163 = scmp.eq.s32.totalorder %s24, 0
      %p164 = por %p162, %p163
      %p165 = scmp.ne.s32.totalorder %s154, %s157
      %p166 = scmp.eq.s32.totalorder %s29, 1
      %p167 = por %p165, %p166
      %p168 = scmp.ne.s32.totalorder %s157, %s158
      %p169 = scmp.eq.s32.totalorder %s29, 0
      %p170 = por %p168, %p169
      %p171 = scmp.ne.s32.totalorder %s157, %s158
      %p172 = scmp.eq.s32.totalorder %s30, 1
      %p173 = por %p171, %p172
      %p175 = scmp.ne.s32.totalorder %s158, %s174
      %p176 = scmp.eq.s32.totalorder %s30, 0
      %p177 = por %p175, %p176
      %s178 = ssub.s32 %s31, %s43
      %s179 = ssub.s32 %s32, %s39
      %s180 = sor.u32 %s178, %s179
      %p181 = scmp.eq.s32.totalorder %s180, 0
      %s183 = sadd.s32 %s182, 1
      %s184 = scalar_select %p181, %s182, %s183
      %p187 = pneg %p181
      %p188 = scmp.eq.s32.totalorder %s24, 1
      %p189 = por %p187, %p188
      %p190 = scmp.ne.s32.totalorder %s182, %s185
      %p191 = scmp.eq.s32.totalorder %s24, 0
      %p192 = por %p190, %p191
      %p193 = scmp.ne.s32.totalorder %s182, %s185
      %p194 = scmp.eq.s32.totalorder %s29, 1
      %p195 = por %p193, %p194
      %p196 = scmp.ne.s32.totalorder %s185, %s186
      %p197 = scmp.eq.s32.totalorder %s29, 0
      %p198 = por %p196, %p197
      %p199 = scmp.ne.s32.totalorder %s185, %s186
      %p200 = scmp.eq.s32.totalorder %s30, 1
      %p201 = por %p199, %p200
      %p203 = scmp.ne.s32.totalorder %s186, %s202
      %p204 = scmp.eq.s32.totalorder %s30, 0
      %p205 = por %p203, %p204
      %p206 = scmp.le.s32.totalorder 1, %s24
      %p207 = scmp.lt.s32.totalorder %s24, 3
      %p208 = pnand %p206, %p207
      %p209 = pneg %p208
      // Predicated region
      $region9: #{tpu_custom_call.1} parent=5 // pred_check
        _
      $region10: #{tpu_custom_call.1} parent=5 // pred_check_branch
        %211 = sbr.rel (%p208) target = $region12
      $region11: #{tpu_custom_call.1} parent=5 // pred_region
        %s212 = ssub.s32 %s24, 1
        // Predicated region
        $region13: #{tpu_custom_call.1} parent=11 // pred_check
          %p213 = pneg %p142
        $region14: #{tpu_custom_call.1} parent=11 // pred_check_branch
          %215 = sbr.rel (%p213) target = $region16
        $region15: #{tpu_custom_call.1} parent=11 // pred_region
          %p216 = scmp.lt.s32.totalorder %s34, 0
          %s217 = scalar_select %p216, %s34, 0
          %s218 = smul.addr %s217, 2
          %s219 = scalar_lea.vmem %s3, %s218
        $region16: #{tpu_custom_call.1} parent=11 // pred_fallthru
          _
      $region12: #{tpu_custom_call.1} parent=5 // pred_fallthru
        _
      %p220 = scmp.lt.s32.totalorder %s24, 2
      // Predicated region
      $region17: #{tpu_custom_call.1} parent=5 // pred_check
        %p221 = pneg %p220
      $region18: #{tpu_custom_call.1} parent=5 // pred_check_branch
        %223 = sbr.rel (%p221) target = $region20
      $region19: #{tpu_custom_call.1} parent=5 // pred_region
        // Predicated region
        $region21: #{tpu_custom_call.1} parent=19 // pred_check
          %p224 = pneg %p58
        $region22: #{tpu_custom_call.1} parent=19 // pred_check_branch
          %226 = sbr.rel (%p224) target = $region24
        $region23: #{tpu_custom_call.1} parent=19 // pred_region
          %s227 = sand.u32 %s48, 1
          %s228 = scalar_lea.sflag [#allocation3], %s227
          %s229 = sand.u32 %s48, 1
          %s230 = smul.addr %s229, 16
          %s231 = scalar_lea.vmem [#allocation2], %s230
          %s232 = smul.u32 2, %s31
          %s234 = ssub.s32 256, 256
          %235 = vsyncadd %s228, %s234
          %s236 = sadd.s32 %s32, %s232
          %s237 = smul.addr %s236, 128
          %s238 = scalar_lea.hbm %s0, %s237
          %s239 = sshll.u32 %s231, 4
          %s240 = int_to_ptr.vmem [resolvable:$true] %s239
          %245 = dma.hbm_to_vmem [thread:$0]  %s238, 256, %s240, %s228, 128, 128, 8
        $region24: #{tpu_custom_call.1} parent=19 // pred_fallthru
          _
        // Predicated region
        $region25: #{tpu_custom_call.1} parent=19 // pred_check
          %p246 = pneg %p84
        $region26: #{tpu_custom_call.1} parent=19 // pred_check_branch
          %248 = sbr.rel (%p246) target = $region28
        $region27: #{tpu_custom_call.1} parent=19 // pred_region
          %s249 = sand.u32 %s24, 1
          %s250 = scalar_lea.sflag [#allocation6], %s249
          %s251 = sand.u32 %s74, 1
          %s252 = smul.addr %s251, 16
          %s253 = scalar_lea.vmem [#allocation5], %s252
          %s254 = smul.u32 2, %s31
          %s256 = ssub.s32 256, 256
          %257 = vsyncadd %s250, %s256
          %s258 = smul.addr %s254, 128
          %s259 = scalar_lea.hbm %s1, %s258
          %s260 = sshll.u32 %s253, 4
          %s261 = int_to_ptr.vmem [resolvable:$true] %s260
          %266 = dma.hbm_to_vmem [thread:$0]  %s259, 256, %s261, %s250, 128, 128, 8
        $region28: #{tpu_custom_call.1} parent=19 // pred_fallthru
          _
        // Predicated region
        $region29: #{tpu_custom_call.1} parent=19 // pred_check
          %p267 = pneg %p110
        $region30: #{tpu_custom_call.1} parent=19 // pred_check_branch
          %269 = sbr.rel (%p267) target = $region32
        $region31: #{tpu_custom_call.1} parent=19 // pred_region
          %s270 = sand.u32 %s24, 1
          %s271 = scalar_lea.sflag [#allocation6], %s270
          %s272 = sand.u32 %s100, 1
          %s273 = smul.addr %s272, 16
          %s274 = scalar_lea.vmem [#allocation7], %s273
          %s275 = smul.u32 2, %s31
          %s277 = ssub.s32 256, 256
          %278 = vsyncadd %s271, %s277
          %s279 = smul.addr %s275, 128
          %s280 = scalar_lea.hbm %s2, %s279
          %s281 = sshll.u32 %s274, 4
          %s282 = int_to_ptr.vmem [resolvable:$true] %s281
          %287 = dma.hbm_to_vmem [thread:$0]  %s280, 256, %s282, %s271, 128, 128, 8
        $region32: #{tpu_custom_call.1} parent=19 // pred_fallthru
          _
      $region20: #{tpu_custom_call.1} parent=5 // pred_fallthru
        _
      %p288 = scmp.le.s32.totalorder 1, %s24
      %p289 = scmp.lt.s32.totalorder %s24, 3
      %p290 = pnand %p288, %p289
      %p291 = pneg %p290
      // Predicated region
      $region33: #{tpu_custom_call.1} parent=5 // pred_check
        _
      $region34: #{tpu_custom_call.1} parent=5 // pred_check_branch
        %293 = sbr.rel (%p290) target = $region36
      $region35: #{tpu_custom_call.1} parent=5 // pred_region
        %s294 = ssub.s32 %s24, 1
        %s295 = sand.u32 %s51, 1
        %s296 = scalar_lea.sflag [#allocation3], %s295
        %s297 = sand.u32 %s51, 1
        %s298 = smul.addr %s297, 16
        %s299 = scalar_lea.vmem [#allocation2], %s298
        // Predicated region
        $region37: #{tpu_custom_call.1} parent=35 // pred_check
          %p300 = pneg %p64
        $region38: #{tpu_custom_call.1} parent=35 // pred_check_branch
          %302 = sbr.rel (%p300) target = $region40
        $region39: #{tpu_custom_call.1} parent=35 // pred_region
          %303 = dma.done %s296, 256
        $region40: #{tpu_custom_call.1} parent=35 // pred_fallthru
          _
        %s304 = sand.u32 %s29, 1
        %s305 = scalar_lea.sflag [#allocation6], %s304
        %s306 = sand.u32 %s77, 1
        %s307 = smul.addr %s306, 16
        %s308 = scalar_lea.vmem [#allocation5], %s307
        // Predicated region
        $region41: #{tpu_custom_call.1} parent=35 // pred_check
          %p309 = pneg %p90
        $region42: #{tpu_custom_call.1} parent=35 // pred_check_branch
          %311 = sbr.rel (%p309) target = $region44
        $region43: #{tpu_custom_call.1} parent=35 // pred_region
          %312 = dma.done %s305, 256
        $region44: #{tpu_custom_call.1} parent=35 // pred_fallthru
          _
        %s313 = sand.u32 %s29, 1
        %s314 = scalar_lea.sflag [#allocation6], %s313
        %s315 = sand.u32 %s103, 1
        %s316 = smul.addr %s315, 16
        %s317 = scalar_lea.vmem [#allocation7], %s316
        // Predicated region
        $region45: #{tpu_custom_call.1} parent=35 // pred_check
          %p318 = pneg %p116
        $region46: #{tpu_custom_call.1} parent=35 // pred_check_branch
          %320 = sbr.rel (%p318) target = $region48
        $region47: #{tpu_custom_call.1} parent=35 // pred_region
          %321 = dma.done %s314, 256
        $region48: #{tpu_custom_call.1} parent=35 // pred_fallthru
          _
        %s322 = sand.u32 %s51, 1
        %s323 = scalar_lea.sflag [#allocation3], %s322
        %s324 = sand.u32 %s51, 1
        %s325 = smul.addr %s324, 16
        %s326 = scalar_lea.vmem [#allocation2], %s325
        %p327 = pneg %p64
        %p328 = pneg %p61
        %s329 = sand.u32 %s29, 1
        %s330 = scalar_lea.sflag [#allocation6], %s329
        %s331 = sand.u32 %s77, 1
        %s332 = smul.addr %s331, 16
        %s333 = scalar_lea.vmem [#allocation5], %s332
        %p334 = pneg %p90
        %p335 = pneg %p87
        %s336 = sand.u32 %s29, 1
        %s337 = scalar_lea.sflag [#allocation6], %s336
        %s338 = sand.u32 %s103, 1
        %s339 = smul.addr %s338, 16
        %s340 = scalar_lea.vmem [#allocation7], %s339
        %p341 = pneg %p116
        %p342 = pneg %p113
        %p343 = scmp.lt.s32.totalorder %s34, 0
        %s344 = scalar_select %p343, %s34, 0
        %s345 = smul.addr %s344, 2
        %s346 = scalar_lea.vmem %s3, %s345
        %p347 = pneg %p142
        %p348 = pneg %p139
        %p349 = pneg %p170
        %p350 = pneg %p167
        %s351 = sand.u32 %s157, 1
        %s352 = scalar_lea.sflag [#allocation4], %s351
        %s353 = sand.u32 %s157, 1
        %s354 = smul.addr %s353, 16
        %s355 = scalar_lea.vmem [#allocation8], %s354
        %p356 = pneg %p198
        %p357 = pneg %p195
        %s358 = sand.u32 %s185, 1
        %s359 = scalar_lea.sflag [#allocation10], %s358
        %s360 = sand.u32 %s185, 1
        %s361 = smul.addr %s360, 16
        %s362 = scalar_lea.vmem [#allocation9], %s361
        %s363 = smul.u32 2, %s33
        %s364 = smul.u32 2, %s33
        %s365 = smul.u32 2, %s33
        %p366 = scmp.lt.s32.totalorder %s34, 0
        %s367 = scalar_select %p366, %s34, 0
        %s368 = smul.addr %s367, 2
        %s369 = scalar_lea.vmem %s3, %s368
        %s370 = smul.u32 2, %s33
        %s371 = smul.u32 2, %s33
        %v374 = vld [vmem:[%s299] sm:$0xff]
        %v375 = vld [vmem:[%s299 + $0x8] sm:$0xff]
        %v376 = vld [vmem:[%s308] sm:$0xff]
        %v377 = vld [vmem:[%s308 + $0x8] sm:$0xff]
        %v378 = vld [vmem:[%s317] sm:$0xff]
        %v379 = vld [vmem:[%s317 + $0x8] sm:$0xff]
        %vm380 = vcmask 261120
        %v382 = vsel %vm380, %v374, 0
        %v385 = vsel %vm380, %v376, 0
        %387 = vmatprep.subr.mxu0 0.0
        %388 = vmatpush1.xpose.msra.mxu0 0.0
        %389 = vmatprep.subr.mxu0 0.0
        %390 = vmatpush1.xpose.msra.mxu0 0.0
        %391 = vmatprep.subr.mxu0 0.0
        %392 = vmatpush1.xpose.msra.mxu0 0.0
        %393 = vmatprep.subr.mxu0 0.0
        %394 = vmatpush1.xpose.msra.mxu0 0.0
        %395 = vmatprep.subr.mxu0 0.0
        %396 = vmatpush1.xpose.msra.mxu0 0.0
        %397 = vmatprep.subr.mxu0 0.0
        %398 = vmatpush1.xpose.msra.mxu0 0.0
        %399 = vmatprep.subr.mxu0 0.0
        %400 = vmatpush1.xpose.msra.mxu0 0.0
        %401 = vmatprep.subr.mxu0 0.0
        %402 = vmatpush1.xpose.msra.mxu0 0.0
        %403 = vmatprep.subr.mxu0 0.0
        %404 = vmatpush1.xpose.msra.mxu0 0.0
        %405 = vmatprep.subr.mxu0 0.0
        %406 = vmatpush1.xpose.msra.mxu0 0.0
        %407 = vmatprep.subr.mxu0 0.0
        %408 = vmatpush1.xpose.msra.mxu0 0.0
        %409 = vmatprep.subr.mxu0 0.0
        %410 = vmatpush1.xpose.msra.mxu0 0.0
        %411 = vmatprep.subr.mxu0 0.0
        %412 = vmatpush1.xpose.msra.mxu0 0.0
        %413 = vmatprep.subr.mxu0 0.0
        %414 = vmatpush1.xpose.msra.mxu0 0.0
        %415 = vmatprep.subr.mxu0 0.0
        %416 = vmatpush1.xpose.msra.mxu0 0.0
        %417 = vmatprep.subr.mxu0 0.0
        %418 = vmatpush1.xpose.msra.mxu0 %v385
        %419 = vmatprep.subr.mxu0 0.0
        %420 = vmatpush2.xpose.msra.mxu0 0.0
        %421 = vmatprep.subr.mxu0 0.0
        %422 = vmatpush2.xpose.msra.mxu0 0.0
        %423 = vmatprep.subr.mxu0 0.0
        %424 = vmatpush2.xpose.msra.mxu0 0.0
        %425 = vmatprep.subr.mxu0 0.0
        %426 = vmatpush2.xpose.msra.mxu0 0.0
        %427 = vmatprep.subr.mxu0 0.0
        %428 = vmatpush2.xpose.msra.mxu0 0.0
        %429 = vmatprep.subr.mxu0 0.0
        %430 = vmatpush2.xpose.msra.mxu0 0.0
        %431 = vmatprep.subr.mxu0 0.0
        %432 = vmatpush2.xpose.msra.mxu0 0.0
        %433 = vmatprep.subr.mxu0 0.0
        %434 = vmatpush2.xpose.msra.mxu0 0.0
        %435 = vmatprep.subr.mxu0 0.0
        %436 = vmatpush2.xpose.msra.mxu0 0.0
        %437 = vmatprep.subr.mxu0 0.0
        %438 = vmatpush2.xpose.msra.mxu0 0.0
        %439 = vmatprep.subr.mxu0 0.0
        %440 = vmatpush2.xpose.msra.mxu0 0.0
        %441 = vmatprep.subr.mxu0 0.0
        %442 = vmatpush2.xpose.msra.mxu0 0.0
        %443 = vmatprep.subr.mxu0 0.0
        %444 = vmatpush2.xpose.msra.mxu0 0.0
        %445 = vmatprep.subr.mxu0 0.0
        %446 = vmatpush2.xpose.msra.mxu0 0.0
        %447 = vmatprep.subr.mxu0 0.0
        %448 = vmatpush2.xpose.msra.mxu0 0.0
        %449 = vmatprep.subr.mxu0 0.0
        %450 = vmatpush2.xpose.msra.mxu0 0.0
        %451 = vmatprep.mubr.f32.mxu0 0.0
        %452 = vmatmul.mubr.f32.gmra.mxu0 %v382
        %v453 = vpop.f32.mrf.mxu0
        %v454 = vadd.f32 0.0, %v453
        %v455 = vpop.f32.mrf.mxu0
        %456 = vdwg.mxu0
        %v458 = vsel %vm380, %v375, 0
        %v461 = vsel %vm380, %v377, 0
        %463 = vmatprep.subr.mxu0 0.0
        %464 = vmatpush1.xpose.msra.mxu0 0.0
        %465 = vmatprep.subr.mxu0 0.0
        %466 = vmatpush1.xpose.msra.mxu0 0.0
        %467 = vmatprep.subr.mxu0 0.0
        %468 = vmatpush1.xpose.msra.mxu0 0.0
        %469 = vmatprep.subr.mxu0 0.0
        %470 = vmatpush1.xpose.msra.mxu0 0.0
        %471 = vmatprep.subr.mxu0 0.0
        %472 = vmatpush1.xpose.msra.mxu0 0.0
        %473 = vmatprep.subr.mxu0 0.0
        %474 = vmatpush1.xpose.msra.mxu0 0.0
        %475 = vmatprep.subr.mxu0 0.0
        %476 = vmatpush1.xpose.msra.mxu0 0.0
        %477 = vmatprep.subr.mxu0 0.0
        %478 = vmatpush1.xpose.msra.mxu0 0.0
        %479 = vmatprep.subr.mxu0 0.0
        %480 = vmatpush1.xpose.msra.mxu0 0.0
        %481 = vmatprep.subr.mxu0 0.0
        %482 = vmatpush1.xpose.msra.mxu0 0.0
        %483 = vmatprep.subr.mxu0 0.0
        %484 = vmatpush1.xpose.msra.mxu0 0.0
        %485 = vmatprep.subr.mxu0 0.0
        %486 = vmatpush1.xpose.msra.mxu0 0.0
        %487 = vmatprep.subr.mxu0 0.0
        %488 = vmatpush1.xpose.msra.mxu0 0.0
        %489 = vmatprep.subr.mxu0 0.0
        %490 = vmatpush1.xpose.msra.mxu0 0.0
        %491 = vmatprep.subr.mxu0 0.0
        %492 = vmatpush1.xpose.msra.mxu0 0.0
        %493 = vmatprep.subr.mxu0 0.0
        %494 = vmatpush1.xpose.msra.mxu0 %v461
        %495 = vmatprep.subr.mxu0 0.0
        %496 = vmatpush2.xpose.msra.mxu0 0.0
        %497 = vmatprep.subr.mxu0 0.0
        %498 = vmatpush2.xpose.msra.mxu0 0.0
        %499 = vmatprep.subr.mxu0 0.0
        %500 = vmatpush2.xpose.msra.mxu0 0.0
        %501 = vmatprep.subr.mxu0 0.0
        %502 = vmatpush2.xpose.msra.mxu0 0.0
        %503 = vmatprep.subr.mxu0 0.0
        %504 = vmatpush2.xpose.msra.mxu0 0.0
        %505 = vmatprep.subr.mxu0 0.0
        %506 = vmatpush2.xpose.msra.mxu0 0.0
        %507 = vmatprep.subr.mxu0 0.0
        %508 = vmatpush2.xpose.msra.mxu0 0.0
        %509 = vmatprep.subr.mxu0 0.0
        %510 = vmatpush2.xpose.msra.mxu0 0.0
        %511 = vmatprep.subr.mxu0 0.0
        %512 = vmatpush2.xpose.msra.mxu0 0.0
        %513 = vmatprep.subr.mxu0 0.0
        %514 = vmatpush2.xpose.msra.mxu0 0.0
        %515 = vmatprep.subr.mxu0 0.0
        %516 = vmatpush2.xpose.msra.mxu0 0.0
        %517 = vmatprep.subr.mxu0 0.0
        %518 = vmatpush2.xpose.msra.mxu0 0.0
        %519 = vmatprep.subr.mxu0 0.0
        %520 = vmatpush2.xpose.msra.mxu0 0.0
        %521 = vmatprep.subr.mxu0 0.0
        %522 = vmatpush2.xpose.msra.mxu0 0.0
        %523 = vmatprep.subr.mxu0 0.0
        %524 = vmatpush2.xpose.msra.mxu0 0.0
        %525 = vmatprep.subr.mxu0 0.0
        %526 = vmatpush2.xpose.msra.mxu0 0.0
        %527 = vmatprep.mubr.f32.mxu0 0.0
        %528 = vmatmul.mubr.f32.gmra.mxu0 %v458
        %v529 = vpop.f32.mrf.mxu0
        %v530 = vadd.f32 0.0, %v529
        %v531 = vpop.f32.mrf.mxu0
        %532 = vdwg.mxu0
        %v533 = vmul.f32 %v454, 0.17677669
        %v534 = vmul.f32 %v530, 0.17677669
        %v535 = vld [vmem:[%s369] sm:$0x3]
        %vm536 = vnez %v535
        %v537 = vsel %vm536, 16843009, 0
        %v538 = vunpack.c.0.s8 %v537
        %vm539 = vcmp.ne.s32.totalorder %v538, 0
        %v540 = vsel %vm539, 1, 0
        %vm541 = vcmp.eq.s32.totalorder %v540, 1
        %v542 = vsel %vm541, %v533, -3.4028235e+38
        %v543 = vsel %vm541, %v534, -3.4028235e+38
        %vm544 = vcmask 64512
        %v545 = vsel %vm544, %v542, -inf
        %546 = vmax.xlane.f32.xlu0 %v545
        %v547 = vpop.xlane.xlu0 %546
        %v548 = vsel %vm544, %v543, -inf
        %549 = vmax.xlane.f32.xlu0 %v548
        %v550 = vpop.xlane.xlu0 %549
        %v551 = vsub.f32 %v542, %v547
        %v552 = vsub.f32 %v543, %v550
        %v553 = vmul.f32 %v551, 1.442695
        %v554 = vpow.pop %v553
        %v555 = vmul.f32 %v552, 1.442695
        %v556 = vpow.pop %v555
        %v557 = vsel %vm544, %v554, 0.0
        %558 = vadd.xlane.f32.xlu0 %v557
        %v559 = vpop.xlane.xlu0 %558
        %v560 = vsel %vm544, %v556, 0.0
        %561 = vadd.xlane.f32.xlu0 %v560
        %v562 = vpop.xlane.xlu0 %561
        %v563 = vrcp.pop %v559
        %v564 = vrcp.pop %v562
        %v565 = vmul.f32 %v554, %v563
        %v566 = vmul.f32 %v556, %v564
        %v568 = vsel %vm544, %v565, 0
        %570 = vmatprep.subr.mxu0 0.0
        %571 = vmatpush1.msra.mxu0 0.0
        %572 = vmatprep.subr.mxu0 0.0
        %573 = vmatpush1.msra.mxu0 0.0
        %574 = vmatprep.subr.mxu0 0.0
        %575 = vmatpush1.msra.mxu0 0.0
        %576 = vmatprep.subr.mxu0 0.0
        %577 = vmatpush1.msra.mxu0 0.0
        %578 = vmatprep.subr.mxu0 0.0
        %579 = vmatpush1.msra.mxu0 0.0
        %580 = vmatprep.subr.mxu0 0.0
        %581 = vmatpush1.msra.mxu0 0.0
        %582 = vmatprep.subr.mxu0 0.0
        %583 = vmatpush1.msra.mxu0 0.0
        %584 = vmatprep.subr.mxu0 0.0
        %585 = vmatpush1.msra.mxu0 0.0
        %586 = vmatprep.subr.mxu0 0.0
        %587 = vmatpush1.msra.mxu0 0.0
        %588 = vmatprep.subr.mxu0 0.0
        %589 = vmatpush1.msra.mxu0 0.0
        %590 = vmatprep.subr.mxu0 0.0
        %591 = vmatpush1.msra.mxu0 0.0
        %592 = vmatprep.subr.mxu0 0.0
        %593 = vmatpush1.msra.mxu0 0.0
        %594 = vmatprep.subr.mxu0 0.0
        %595 = vmatpush1.msra.mxu0 0.0
        %596 = vmatprep.subr.mxu0 0.0
        %597 = vmatpush1.msra.mxu0 0.0
        %598 = vmatprep.subr.mxu0 0.0
        %599 = vmatpush1.msra.mxu0 0.0
        %600 = vmatprep.subr.mxu0 0.0
        %601 = vmatpush1.msra.mxu0 %v378
        %602 = vmatprep.subr.mxu0 0.0
        %603 = vmatpush2.msra.mxu0 0.0
        %604 = vmatprep.subr.mxu0 0.0
        %605 = vmatpush2.msra.mxu0 0.0
        %606 = vmatprep.subr.mxu0 0.0
        %607 = vmatpush2.msra.mxu0 0.0
        %608 = vmatprep.subr.mxu0 0.0
        %609 = vmatpush2.msra.mxu0 0.0
        %610 = vmatprep.subr.mxu0 0.0
        %611 = vmatpush2.msra.mxu0 0.0
        %612 = vmatprep.subr.mxu0 0.0
        %613 = vmatpush2.msra.mxu0 0.0
        %614 = vmatprep.subr.mxu0 0.0
        %615 = vmatpush2.msra.mxu0 0.0
        %616 = vmatprep.subr.mxu0 0.0
        %617 = vmatpush2.msra.mxu0 0.0
        %618 = vmatprep.subr.mxu0 0.0
        %619 = vmatpush2.msra.mxu0 0.0
        %620 = vmatprep.subr.mxu0 0.0
        %621 = vmatpush2.msra.mxu0 0.0
        %622 = vmatprep.subr.mxu0 0.0
        %623 = vmatpush2.msra.mxu0 0.0
        %624 = vmatprep.subr.mxu0 0.0
        %625 = vmatpush2.msra.mxu0 0.0
        %626 = vmatprep.subr.mxu0 0.0
        %627 = vmatpush2.msra.mxu0 0.0
        %628 = vmatprep.subr.mxu0 0.0
        %629 = vmatpush2.msra.mxu0 0.0
        %630 = vmatprep.subr.mxu0 0.0
        %631 = vmatpush2.msra.mxu0 0.0
        %632 = vmatprep.subr.mxu0 0.0
        %633 = vmatpush2.msra.mxu0 0.0
        %634 = vmatprep.mubr.f32.mxu0 0.0
        %635 = vmatmul.mubr.f32.gmra.mxu0 %v568
        %v636 = vpop.f32.mrf.mxu0
        %v637 = vadd.f32 0.0, %v636
        %v638 = vpop.f32.mrf.mxu0
        %639 = vdwg.mxu0
        %v641 = vsel %vm544, %v566, 0
        %643 = vmatprep.subr.mxu0 0.0
        %644 = vmatpush1.msra.mxu0 0.0
        %645 = vmatprep.subr.mxu0 0.0
        %646 = vmatpush1.msra.mxu0 0.0
        %647 = vmatprep.subr.mxu0 0.0
        %648 = vmatpush1.msra.mxu0 0.0
        %649 = vmatprep.subr.mxu0 0.0
        %650 = vmatpush1.msra.mxu0 0.0
        %651 = vmatprep.subr.mxu0 0.0
        %652 = vmatpush1.msra.mxu0 0.0
        %653 = vmatprep.subr.mxu0 0.0
        %654 = vmatpush1.msra.mxu0 0.0
        %655 = vmatprep.subr.mxu0 0.0
        %656 = vmatpush1.msra.mxu0 0.0
        %657 = vmatprep.subr.mxu0 0.0
        %658 = vmatpush1.msra.mxu0 0.0
        %659 = vmatprep.subr.mxu0 0.0
        %660 = vmatpush1.msra.mxu0 0.0
        %661 = vmatprep.subr.mxu0 0.0
        %662 = vmatpush1.msra.mxu0 0.0
        %663 = vmatprep.subr.mxu0 0.0
        %664 = vmatpush1.msra.mxu0 0.0
        %665 = vmatprep.subr.mxu0 0.0
        %666 = vmatpush1.msra.mxu0 0.0
        %667 = vmatprep.subr.mxu0 0.0
        %668 = vmatpush1.msra.mxu0 0.0
        %669 = vmatprep.subr.mxu0 0.0
        %670 = vmatpush1.msra.mxu0 0.0
        %671 = vmatprep.subr.mxu0 0.0
        %672 = vmatpush1.msra.mxu0 0.0
        %673 = vmatprep.subr.mxu0 0.0
        %674 = vmatpush1.msra.mxu0 %v379
        %675 = vmatprep.subr.mxu0 0.0
        %676 = vmatpush2.msra.mxu0 0.0
        %677 = vmatprep.subr.mxu0 0.0
        %678 = vmatpush2.msra.mxu0 0.0
        %679 = vmatprep.subr.mxu0 0.0
        %680 = vmatpush2.msra.mxu0 0.0
        %681 = vmatprep.subr.mxu0 0.0
        %682 = vmatpush2.msra.mxu0 0.0
        %683 = vmatprep.subr.mxu0 0.0
        %684 = vmatpush2.msra.mxu0 0.0
        %685 = vmatprep.subr.mxu0 0.0
        %686 = vmatpush2.msra.mxu0 0.0
        %687 = vmatprep.subr.mxu0 0.0
        %688 = vmatpush2.msra.mxu0 0.0
        %689 = vmatprep.subr.mxu0 0.0
        %690 = vmatpush2.msra.mxu0 0.0
        %691 = vmatprep.subr.mxu0 0.0
        %692 = vmatpush2.msra.mxu0 0.0
        %693 = vmatprep.subr.mxu0 0.0
        %694 = vmatpush2.msra.mxu0 0.0
        %695 = vmatprep.subr.mxu0 0.0
        %696 = vmatpush2.msra.mxu0 0.0
        %697 = vmatprep.subr.mxu0 0.0
        %698 = vmatpush2.msra.mxu0 0.0
        %699 = vmatprep.subr.mxu0 0.0
        %700 = vmatpush2.msra.mxu0 0.0
        %701 = vmatprep.subr.mxu0 0.0
        %702 = vmatpush2.msra.mxu0 0.0
        %703 = vmatprep.subr.mxu0 0.0
        %704 = vmatpush2.msra.mxu0 0.0
        %705 = vmatprep.subr.mxu0 0.0
        %706 = vmatpush2.msra.mxu0 0.0
        %707 = vmatprep.mubr.f32.mxu0 0.0
        %708 = vmatmul.mubr.f32.gmra.mxu0 %v641
        %v709 = vpop.f32.mrf.mxu0
        %v710 = vadd.f32 0.0, %v709
        %v711 = vpop.f32.mrf.mxu0
        %712 = vdwg.mxu0
        %713 = vst.msk [vmem:[%s355] sm:$0xff] %vm380, %v637
        %714 = vst.msk [vmem:[%s355 + $0x8] sm:$0xff] %vm380, %v710
        %715 = vst.msk [vmem:[%s362] sm:$0xff] %vm544, %v565
        %716 = vst.msk [vmem:[%s362 + $0x8] sm:$0xff] %vm544, %v566
        %s717 = sand.u32 %s157, 1
        %s718 = scalar_lea.sflag [#allocation4], %s717
        %s719 = sand.u32 %s157, 1
        %s720 = smul.addr %s719, 16
        %s721 = scalar_lea.vmem [#allocation8], %s720
        %s722 = sand.u32 %s185, 1
        %s723 = scalar_lea.sflag [#allocation10], %s722
        %s724 = sand.u32 %s185, 1
        %s725 = smul.addr %s724, 16
        %s726 = scalar_lea.vmem [#allocation9], %s725
        // Predicated region
        $region49: #{tpu_custom_call.1} parent=35 // pred_check
          %p727 = pneg %p167
        $region50: #{tpu_custom_call.1} parent=35 // pred_check_branch
          %729 = sbr.rel (%p727) target = $region52
        $region51: #{tpu_custom_call.1} parent=35 // pred_region
          %s730 = smul.u32 2, %s33
          %s732 = ssub.s32 256, 256
          %733 = vsyncadd %s718, %s732
          %s734 = sadd.s32 %s34, %s730
          %s735 = smul.addr %s734, 128
          %s736 = scalar_lea.hbm %s4, %s735
          %s737 = sshll.u32 %s721, 4
          %s738 = int_to_ptr.vmem [resolvable:$true] %s737
          %743 = dma.vmem_to_hbm [thread:$0]  %s738, 256, %s736, %s718, 128, 128, 8
        $region52: #{tpu_custom_call.1} parent=35 // pred_fallthru
          _
        // Predicated region
        $region53: #{tpu_custom_call.1} parent=35 // pred_check
          %p744 = pneg %p195
        $region54: #{tpu_custom_call.1} parent=35 // pred_check_branch
          %746 = sbr.rel (%p744) target = $region56
        $region55: #{tpu_custom_call.1} parent=35 // pred_region
          %s747 = smul.u32 2, %s33
          %s749 = ssub.s32 256, 256
          %750 = vsyncadd %s723, %s749
          %s751 = sadd.s32 %s34, %s747
          %s752 = smul.addr %s751, 128
          %s753 = scalar_lea.hbm %s5, %s752
          %s754 = sshll.u32 %s726, 4
          %s755 = int_to_ptr.vmem [resolvable:$true] %s754
          %760 = dma.vmem_to_hbm [thread:$0]  %s755, 256, %s753, %s723, 128, 128, 8
        $region56: #{tpu_custom_call.1} parent=35 // pred_fallthru
          _
      $region36: #{tpu_custom_call.1} parent=5 // pred_fallthru
        _
      %p761 = scmp.le.s32.totalorder 2, %s24
      // Predicated region
      $region57: #{tpu_custom_call.1} parent=5 // pred_check
        %p762 = pneg %p761
      $region58: #{tpu_custom_call.1} parent=5 // pred_check_branch
        %764 = sbr.rel (%p762) target = $region60
      $region59: #{tpu_custom_call.1} parent=5 // pred_region
        %s765 = ssub.s32 %s24, 2
        // Predicated region
        $region61: #{tpu_custom_call.1} parent=59 // pred_check
          %p766 = pneg %p173
        $region62: #{tpu_custom_call.1} parent=59 // pred_check_branch
          %768 = sbr.rel (%p766) target = $region64
        $region63: #{tpu_custom_call.1} parent=59 // pred_region
          %s769 = sand.u32 %s158, 1
          %s770 = scalar_lea.sflag [#allocation4], %s769
          %s771 = sand.u32 %s158, 1
          %s772 = smul.addr %s771, 16
          %s773 = scalar_lea.vmem [#allocation8], %s772
          %774 = dma.done %s770, 256
        $region64: #{tpu_custom_call.1} parent=59 // pred_fallthru
          _
        // Predicated region
        $region65: #{tpu_custom_call.1} parent=59 // pred_check
          %p775 = pneg %p201
        $region66: #{tpu_custom_call.1} parent=59 // pred_check_branch
          %777 = sbr.rel (%p775) target = $region68
        $region67: #{tpu_custom_call.1} parent=59 // pred_region
          %s778 = sand.u32 %s186, 1
          %s779 = scalar_lea.sflag [#allocation10], %s778
          %s780 = sand.u32 %s186, 1
          %s781 = smul.addr %s780, 16
          %s782 = scalar_lea.vmem [#allocation9], %s781
          %783 = dma.done %s779, 256
        $region68: #{tpu_custom_call.1} parent=59 // pred_fallthru
          _
      $region60: #{tpu_custom_call.1} parent=5 // pred_fallthru
        _
    $region6: #{tpu_custom_call.1} parent=1 // loop_footer
      %s28 = sadd.s32 1, %s24
    $region7: #{tpu_custom_call.1} parent=1 // loop_footer_branch
      %23 = sbr.rel target = $region3
    $region8: #{tpu_custom_call.1} parent=1 // loop_exit
      _
    %784 = vsyncpa [#allocation3], 1
    %s785 = scalar_lea.sflag [#allocation3], 1
    %786 = vsyncpa %s785, 1
    %787 = vsyncpa [#allocation6], 1
    %s788 = scalar_lea.sflag [#allocation6], 1
    %789 = vsyncpa %s788, 1
    %790 = vsyncpa [#allocation4], 1
    %s791 = scalar_lea.sflag [#allocation4], 1
    %792 = vsyncpa %s791, 1
    %793 = vsyncpa [#allocation10], 1
    %s794 = scalar_lea.sflag [#allocation10], 1
    %795 = vsyncpa %s794, 1

</llo_original>
